<compile_context>
chip_gen: v5e
topology: v5e:2x2
jax: 0.10.0
libtpu: 0.0.40
codegen_flags: <defaults>
</compile_context>

<pallas_src>
import jax
import jax.numpy as jnp
from jax.experimental import pallas as pl
from jax.experimental.pallas import tpu as pltpu

_TARGET_BLOCK_BYTES = 4 * 1024 * 1024   # ~4 MiB per block (good on v5e/v6e/v7x)
_VMEM_LIMIT_BYTES = 32 * 1024 * 1024    # explicit scoped-VMEM limit; fits all chips


def _scalar_scale_kernel(scale_ref, x_ref, o_ref):
    # scale_ref: (1, 1) f32 = exp(weight), precomputed in the wrapper, lives in SMEM.
    # x_ref / o_ref: (tile_rows, cols) VMEM tiles.
    scale = scale_ref[0, 0]
    o_ref[...] = (x_ref[...] * scale).astype(o_ref.dtype)


def _round_up(v, m):
    return -(-v // m) * m


def _choose_2d_view(x):
    """Zero-copy 2-D view (rows, cols) of x; prefers a lane-dense cols (1024..128)."""
    total = x.size
    for lanes in (1024, 512, 256, 128):
        if total % lanes == 0:
            return x.reshape(total // lanes, lanes)
    # Ragged total (not a multiple of 128): keep the natural trailing dim so the
    # reshape stays zero-copy; the block then uses the full (un-tiled) last dim.
    if x.ndim >= 2:
        return x.reshape(-1, x.shape[-1])
    return x.reshape(1, total)  # rare: ragged 1-D input -> one full-extent row


def _choose_tile_rows(rows, cols, elem_bytes):
    """Row-tile size: multiple of 8 (or full extent), <= ~4 MiB/block, and small
    enough that rows >= 16 always yields >= 2 grid tiles (v7x dual-TC sharding)."""
    if rows < 16:
        return rows  # full-extent block (legal even when not a multiple of 8)
    cols_padded = _round_up(cols, 128)                 # VMEM lane padding
    row_bytes = cols_padded * elem_bytes
    max_rows_by_bytes = max(8, (_TARGET_BLOCK_BYTES // row_bytes) // 8 * 8)
    half_rows = _round_up(-(-rows // 2), 8)            # ensures grid >= 2
    return min(max_rows_by_bytes, half_rows)


def my_scalar_model_forward(x, weight):
    """Equivalent of PyTorch: return x * weight.exp()   (weight shape (1, 1))."""
    orig_shape = x.shape
    total = x.size
    out_dtype = jnp.result_type(x.dtype, jnp.float32)  # torch promotion (weight is f32)

    # Hoist the transcendental out of the (HBM-bandwidth-bound) kernel.
    scale = jnp.exp(weight.astype(jnp.float32)).reshape(1, 1)

    x2d = _choose_2d_view(x)
    rows, cols = x2d.shape
    elem_bytes = max(jnp.dtype(x.dtype).itemsize, jnp.dtype(out_dtype).itemsize)
    tile_rows = _choose_tile_rows(rows, cols, elem_bytes)
    grid = (pl.cdiv(rows, tile_rows),)  # partial final block handled by Pallas masking

    out2d = pl.pallas_call(
        _scalar_scale_kernel,
        out_shape=jax.ShapeDtypeStruct((rows, cols), out_dtype),
        grid=grid,
        in_specs=[
            pl.BlockSpec(memory_space=pltpu.SMEM),              # scalar exp(weight)
            pl.BlockSpec((tile_rows, cols), lambda i: (i, 0)),  # x tile
        ],
        out_specs=pl.BlockSpec((tile_rows, cols), lambda i: (i, 0)),
        compiler_params=pltpu.CompilerParams(
            dimension_semantics=("parallel",),    # lets v7x shard tiles across both TCs
            vmem_limit_bytes=_VMEM_LIMIT_BYTES,   # ~16 MiB actually used (2x in + 2x out)
        ),
        cost_estimate=pl.CostEstimate(
            flops=total,
            transcendentals=0,
            bytes_accessed=total * (jnp.dtype(x.dtype).itemsize
                                    + jnp.dtype(out_dtype).itemsize),
        ),
    )(scale, x2d)

    return out2d.reshape(orig_shape)  # rows*cols == total, so this reshape is free


if __name__ == "__main__":
    key = jax.random.PRNGKey(0)
    k0, k1, k2 = jax.random.split(key, 3)

    # Parameter: nn.Parameter(torch.Tensor(1, 1)), init constant 0.0
    weight = jnp.zeros((1, 1), dtype=jnp.float32)

    # Primary small example (NCHW-style): aligned zero-copy path, single block.
    x = jax.random.normal(k0, (2, 4, 16, 16), dtype=jnp.float32)
    out = jax.block_until_ready(my_scalar_model_forward(x, weight))
    ref = x * jnp.exp(weight[0, 0])
    assert out.shape == x.shape and out.dtype == x.dtype
    assert jnp.allclose(out, ref, atol=1e-6), "mismatch vs reference (primary shape)"

    # Multi-tile aligned path: 250 rows x 1024 lanes, tile_rows=128 -> grid=2 with a
    # masked partial final block (exercises >=2 parallel tiles + boundary masking).
    w2 = jnp.full((1, 1), 0.3, dtype=jnp.float32)
    x_big = jax.random.normal(k1, (10, 100, 16, 16), dtype=jnp.float32)
    out_big = jax.block_until_ready(my_scalar_model_forward(x_big, w2))
    assert jnp.allclose(out_big, x_big * jnp.exp(w2[0, 0]), atol=1e-5), "mismatch (tiled shape)"

    # Ragged total (2958 elems, not a multiple of 128): zero-copy (102, 29) view with a
    # full-extent lane dim and a masked partial final row block. No pad / slice-back.
    x_rag = jax.random.normal(k2, (2, 3, 17, 29), dtype=jnp.float32)
    out_rag = jax.block_until_ready(my_scalar_model_forward(x_rag, w2))
    assert jnp.allclose(out_rag, x_rag * jnp.exp(w2[0, 0]), atol=1e-5), "mismatch (ragged shape)"

    print("KERNEL_OK")
</pallas_src>

<mosaic_0001>
module attributes {stable_mosaic.version = 11 : i64} {
  func.func @_scalar_scale_kernel(%arg0: i32, %arg1: memref<1x1xf32, #tpu.memory_space<smem>>, %arg2: memref<2x1024xf32, #tpu.memory_space<vmem>>, %arg3: memref<2x1024xf32, #tpu.memory_space<vmem>>) attributes {dimension_semantics = [#tpu.dimension_semantics<parallel>], iteration_bounds = array<i64: 1>, scalar_prefetch = 0 : i64, scratch_operands = 0 : i64, tpu.core_type = #tpu.core_type<tc>, window_params = [{transform_indices = @transform_0, window_bounds = array<i64: 1, 1>}, {transform_indices = @transform_1, window_bounds = array<i64: 2, 1024>}, {transform_indices = @transform_2, window_bounds = array<i64: 2, 1024>}]} {
    %c0 = arith.constant 0 : index
    %c0_0 = arith.constant 0 : index
    %0 = memref.load %arg1[%c0, %c0_0] : memref<1x1xf32, #tpu.memory_space<smem>>
    %c0_1 = arith.constant 0 : index
    %c0_2 = arith.constant 0 : index
    %1 = vector.load %arg2[%c0_1, %c0_2] : memref<2x1024xf32, #tpu.memory_space<vmem>>, vector<2x1024xf32>
    %2 = vector.broadcast %0 : f32 to vector<2x1024xf32>
    %3 = arith.mulf %1, %2 : vector<2x1024xf32>
    %c0_3 = arith.constant 0 : index
    %c0_4 = arith.constant 0 : index
    %4 = vector.load %arg3[%c0_3, %c0_4] : memref<2x1024xf32, #tpu.memory_space<vmem>>, vector<2x1024xf32>
    tpu.vector_store %arg3[%c0_3, %c0_4], %3 {strides = array<i32>} : memref<2x1024xf32, #tpu.memory_space<vmem>>, vector<2x1024xf32>,
    return
  }
  func.func @transform_0(%arg0: i32) -> (i32, i32) {
    %c0_i32 = arith.constant 0 : i32
    %c0_i32_0 = arith.constant 0 : i32
    %c0_i32_1 = arith.constant 0 : i32
    return %c0_i32, %c0_i32_0 : i32, i32
  }
  func.func @transform_1(%arg0: i32) -> (i32, i32) {
    %c0_i32 = arith.constant 0 : i32
    %c0_i32_0 = arith.constant 0 : i32
    return %arg0, %c0_i32 : i32, i32
  }
  func.func @transform_2(%arg0: i32) -> (i32, i32) {
    %c0_i32 = arith.constant 0 : i32
    %c0_i32_0 = arith.constant 0 : i32
    return %arg0, %c0_i32 : i32, i32
  }
}

</mosaic_0001>

<llo_original>
// kernel: tpu_custom_call.1
$region0: #{tpu_custom_call.1}
  #allocation0 [shape = 'u32[]', space=smem, size = 0x4, offset = 0x4, fixed_abs, tag = 'smem constant byte address 0x4 - core index']
  #allocation1 [shape = 'u32[72,128]{1,0:T(1,128)}', space=vmem, size = 0x9000, scoped, tag = 'internal scratch']
  #allocation2 [shape = 'f32[1,1]{1,0:T(1,128)S(6)}', space=smem, size = 0x200, scoped, tag = 'scoped memory for tpu_custom_call.1']
  %s0 = inlined_call_operand.<no memory space> [shape: f32[1,1], index: 0, kind: input, shape index: {}]
  %s1 = inlined_call_operand.hbm [shape: f32[2,1024], index: 1, kind: input, shape index: {}]
  %s2 = inlined_call_operand.hbm [shape: f32[2,1024], index: 2, kind: output, shape index: {}]
  %s3 = sld [smem:[#allocation0]]
  $region22: #{tpu_custom_call.1} parent=0
    _
  %s5 = ssub.s32 1, %s3
  %s6 = scalar_select 0, %s5, %s3
  %7 = sst [smem:[#allocation2]] %s0
  $region1: #{tpu_custom_call.1} parent=0
    #allocation3 [shape = 'u8[8192]{0}', space=vmem, size = 0x2000, scoped, tag = 'input window, operand 1, single buffered']
    #allocation4 [shape = 's32[1]{0}', space=sflag, size = 0x4, scoped, tag = 'scoped memory for tpu_custom_call.1']
    #allocation5 [shape = 's32[1]{0}', space=sflag, size = 0x4, scoped, tag = 'scoped memory for tpu_custom_call.1']
    #allocation6 [shape = 'u8[8192]{0}', space=vmem, size = 0x2000, scoped, tag = 'output window, operand 0, single buffered']
    %8 = vsyncpa [#allocation4], 0
    %9 = vsyncpa [#allocation5], 0
    // Predicated region
    $region2: #{tpu_custom_call.1} parent=1 // pred_check
      _
    $region3: #{tpu_custom_call.1} parent=1 // pred_check_branch
      %11 = sbr.rel (0) target = $region5
    $region4: #{tpu_custom_call.1} parent=1 // pred_region
      _
    $region5: #{tpu_custom_call.1} parent=1 // pred_fallthru
      _
    // Predicated region
    $region6: #{tpu_custom_call.1} parent=1 // pred_check
      _
    $region7: #{tpu_custom_call.1} parent=1 // pred_check_branch
      %13 = sbr.rel (0) target = $region9
    $region8: #{tpu_custom_call.1} parent=1 // pred_region
      %15 = vsyncadd [#allocation4], 0
      %s17 = sshll.u32 %s1, 4
      %s18 = int_to_ptr.hbm [resolvable:$true] %s17
      %s19 = sshll.u32 [#allocation3], 4
      %s20 = int_to_ptr.vmem [resolvable:$true] %s19
      %22 = dma.hbm_to_vmem [thread:$0]  %s18, 256, %s20, [#allocation4]
    $region9: #{tpu_custom_call.1} parent=1 // pred_fallthru
      _
    // Predicated region
    $region10: #{tpu_custom_call.1} parent=1 // pred_check
      _
    $region11: #{tpu_custom_call.1} parent=1 // pred_check_branch
      %24 = sbr.rel (0) target = $region13
    $region12: #{tpu_custom_call.1} parent=1 // pred_region
      %26 = dma.done [#allocation4], 256
    $region13: #{tpu_custom_call.1} parent=1 // pred_fallthru
      _
    %s27 = sld [smem:[#allocation2]]
    %v28 = vld [vmem:[#allocation3] sm:$0xff]
    %v29 = vld [vmem:[#allocation3 + $0x8] sm:$0xff]
    %v30 = vstv %s27
    %v31 = vmul.f32 %v28, %v30
    %v32 = vmul.f32 %v29, %v30
    %33 = vst [vmem:[#allocation6] sm:$0xff] %v31
    %34 = vst [vmem:[#allocation6 + $0x8] sm:$0xff] %v32
    // Predicated region
    $region14: #{tpu_custom_call.1} parent=1 // pred_check
      _
    $region15: #{tpu_custom_call.1} parent=1 // pred_check_branch
      %36 = sbr.rel (0) target = $region17
    $region16: #{tpu_custom_call.1} parent=1 // pred_region
      %38 = vsyncadd [#allocation5], 0
      %s40 = sshll.u32 [#allocation6], 4
      %s41 = int_to_ptr.vmem [resolvable:$true] %s40
      %s42 = sshll.u32 %s2, 4
      %s43 = int_to_ptr.hbm [resolvable:$true] %s42
      %45 = dma.vmem_to_hbm [thread:$0]  %s41, 256, %s43, [#allocation5]
    $region17: #{tpu_custom_call.1} parent=1 // pred_fallthru
      _
    // Predicated region
    $region18: #{tpu_custom_call.1} parent=1 // pred_check
      _
    $region19: #{tpu_custom_call.1} parent=1 // pred_check_branch
      %47 = sbr.rel (0) target = $region21
    $region20: #{tpu_custom_call.1} parent=1 // pred_region
      %49 = dma.done [#allocation5], 256
    $region21: #{tpu_custom_call.1} parent=1 // pred_fallthru
      _
    %50 = vsyncpa [#allocation4], 1
    %51 = vsyncpa [#allocation5], 1

</llo_original>
